<compile_context>
chip_gen: v7x
topology: tpu7x:2x2x1
jax: 0.10.0
libtpu: 0.0.40
codegen_flags: <defaults>
</compile_context>

<pallas_src>
import jax
import jax.numpy as jnp
from jax.experimental import pallas as pl
from jax.experimental.pallas import tpu as pltpu


def linear_1x1_kernel(w_ref, b_ref, x_ref, o_ref):
    # w_ref, b_ref: (1,) scalars in SMEM (broadcast to every element)
    # x_ref, o_ref: (TILE_R, LANES) lane-dense slab tiles in VMEM
    w = w_ref[0]
    b = b_ref[0]
    o_ref[...] = x_ref[...] * w + b  # VPU fused multiply-add, no MXU


def linear_forward(x, w, b, *, lanes=512, tile_r=512):
    """Computes x @ w.T + b for x:(N,1), w:(1,1), b:(1,). Any N is supported."""
    n, in_f = x.shape
    assert in_f == 1 and w.shape == (1, 1) and b.shape == (1,)

    # ---- lane-dense repack: (N, 1) -> (rows_padded, lanes) -------------------
    rows = pl.cdiv(n, lanes)
    if rows <= tile_r:
        # Small input: one grid step, block == full array (rows rounded to
        # a sublane multiple of 8).
        tile_r_eff = max(8, ((rows + 7) // 8) * 8)
        rows_padded = tile_r_eff
    else:
        # Large input: multi-MiB blocks, rows padded to a tile multiple.
        tile_r_eff = tile_r
        rows_padded = pl.cdiv(rows, tile_r) * tile_r

    total = rows_padded * lanes
    flat = jnp.pad(x.reshape(-1), (0, total - n))
    x2d = flat.reshape(rows_padded, lanes)

    grid = (rows_padded // tile_r_eff,)

    # Per-block VMEM: (tile_r_eff * lanes * 4B) for x and for out, each
    # double-buffered.  Default 512x512 f32 blocks -> ~4 MiB total, safely
    # under the scoped-VMEM default on v5e (16 MiB), v6e (32 MiB) and v7x.
    out2d = pl.pallas_call(
        linear_1x1_kernel,
        out_shape=jax.ShapeDtypeStruct((rows_padded, lanes), x.dtype),
        grid_spec=pltpu.PrefetchScalarGridSpec(
            num_scalar_prefetch=0,
            grid=grid,
            in_specs=[
                pl.BlockSpec(memory_space=pltpu.MemorySpace.SMEM),  # w (1,)
                pl.BlockSpec(memory_space=pltpu.MemorySpace.SMEM),  # b (1,)
                pl.BlockSpec((tile_r_eff, lanes), lambda i: (i, 0)),  # x slab
            ],
            out_specs=pl.BlockSpec((tile_r_eff, lanes), lambda i: (i, 0)),
        ),
        compiler_params=pltpu.CompilerParams(
            # "parallel" lets the row-tile axis shard across both TensorCores
            # on v7x; it is neutral on v5e/v6e.
            dimension_semantics=("parallel",),
        ),
    )(w.reshape(-1), b, x2d)

    # ---- unpack back to (N, 1) ----------------------------------------------
    return out2d.reshape(-1)[:n].reshape(n, 1)


if __name__ == "__main__":
    key = jax.random.PRNGKey(0)
    kx, kw, kb = jax.random.split(key, 3)

    # Batch consistent with the original module: x ~ uniform(0, 1), shape (n, 1)
    n = 1000
    x = jax.random.uniform(kx, (n, 1), dtype=jnp.float32, minval=0.0, maxval=1.0)

    # nn.Linear(1, 1) parameter shapes: weight (1, 1), bias (1,);
    # uniform(-1, 1) matches the Kaiming bound for fan_in = 1.
    w = jax.random.uniform(kw, (1, 1), dtype=jnp.float32, minval=-1.0, maxval=1.0)
    b = jax.random.uniform(kb, (1,), dtype=jnp.float32, minval=-1.0, maxval=1.0)

    y = linear_forward(x, w, b)
    y = jax.block_until_ready(y)

    # Reference check against plain JAX
    y_ref = x @ w.T + b
    assert y.shape == (n, 1)
    assert jnp.allclose(y, y_ref, atol=1e-6, rtol=1e-6)

    print("KERNEL_OK")
</pallas_src>

<mosaic_0001>
module attributes {stable_mosaic.version = 11 : i64} {
  func.func @linear_1x1_kernel(%arg0: i32, %arg1: memref<1xf32, #tpu.memory_space<smem>>, %arg2: memref<1xf32, #tpu.memory_space<smem>>, %arg3: memref<8x512xf32, #tpu.memory_space<vmem>>, %arg4: memref<8x512xf32, #tpu.memory_space<vmem>>) attributes {dimension_semantics = [#tpu.dimension_semantics<parallel>], iteration_bounds = array<i64: 1>, scalar_prefetch = 0 : i64, scratch_operands = 0 : i64, tpu.core_type = #tpu.core_type<tc>, window_params = [{transform_indices = @transform_0, window_bounds = array<i64: 1>}, {transform_indices = @transform_1, window_bounds = array<i64: 1>}, {transform_indices = @transform_2, window_bounds = array<i64: 8, 512>}, {transform_indices = @transform_3, window_bounds = array<i64: 8, 512>}]} {
    %c0 = arith.constant 0 : index
    %0 = memref.load %arg1[%c0] : memref<1xf32, #tpu.memory_space<smem>>
    %c0_0 = arith.constant 0 : index
    %1 = memref.load %arg2[%c0_0] : memref<1xf32, #tpu.memory_space<smem>>
    %c0_1 = arith.constant 0 : index
    %c0_2 = arith.constant 0 : index
    %2 = vector.load %arg3[%c0_1, %c0_2] : memref<8x512xf32, #tpu.memory_space<vmem>>, vector<8x512xf32>
    %3 = vector.broadcast %0 : f32 to vector<8x512xf32>
    %4 = arith.mulf %2, %3 : vector<8x512xf32>
    %5 = vector.broadcast %1 : f32 to vector<8x512xf32>
    %6 = arith.addf %4, %5 : vector<8x512xf32>
    %c0_3 = arith.constant 0 : index
    %c0_4 = arith.constant 0 : index
    %7 = vector.load %arg4[%c0_3, %c0_4] : memref<8x512xf32, #tpu.memory_space<vmem>>, vector<8x512xf32>
    tpu.vector_store %arg4[%c0_3, %c0_4], %6 {strides = array<i32>} : memref<8x512xf32, #tpu.memory_space<vmem>>, vector<8x512xf32>,
    return
  }
  func.func @transform_0(%arg0: i32) -> i32 {
    %c0_i32 = arith.constant 0 : i32
    %c0_i32_0 = arith.constant 0 : i32
    return %c0_i32 : i32
  }
  func.func @transform_1(%arg0: i32) -> i32 {
    %c0_i32 = arith.constant 0 : i32
    %c0_i32_0 = arith.constant 0 : i32
    return %c0_i32 : i32
  }
  func.func @transform_2(%arg0: i32) -> (i32, i32) {
    %c0_i32 = arith.constant 0 : i32
    %c0_i32_0 = arith.constant 0 : i32
    return %arg0, %c0_i32 : i32, i32
  }
  func.func @transform_3(%arg0: i32) -> (i32, i32) {
    %c0_i32 = arith.constant 0 : i32
    %c0_i32_0 = arith.constant 0 : i32
    return %arg0, %c0_i32 : i32, i32
  }
}

</mosaic_0001>

<llo_original>
// kernel: tpu_custom_call.1
$region0: #{tpu_custom_call.1}
  #allocation0 [shape = 'u32[]', space=smem, size = 0x4, offset = 0x4, fixed_abs, tag = 'smem constant byte address 0x4 - core index']
  #allocation1 [shape = 'u32[144,128]{1,0:T(1,128)}', space=vmem, size = 0x12000, scoped, tag = 'internal scratch']
  #allocation2 [shape = 'f32[1]{0:T(128)S(6)}', space=smem, size = 0x200, scoped, tag = 'scoped memory for tpu_custom_call.1']
  #allocation3 [shape = 'f32[1]{0:T(128)S(6)}', space=smem, size = 0x200, scoped, tag = 'scoped memory for tpu_custom_call.1']
  %s0 = inlined_call_operand.<no memory space> [shape: f32[1], index: 0, kind: input, shape index: {}]
  %s1 = inlined_call_operand.<no memory space> [shape: f32[1], index: 1, kind: input, shape index: {}]
  %s2 = inlined_call_operand.hbm [shape: f32[8,512], index: 2, kind: input, shape index: {}]
  %s3 = inlined_call_operand.hbm [shape: f32[8,512], index: 3, kind: output, shape index: {}]
  %s4 = sld [smem:[#allocation0]]
  $region26: #{tpu_custom_call.1} parent=0
    _
  %s6 = ssub.s32 1, %s4
  %s7 = scalar_select 0, %s6, %s4
  %8 = sst [smem:[#allocation2]] %s0
  %9 = sst [smem:[#allocation3]] %s1
  $region1: #{tpu_custom_call.1} parent=0
    #allocation4 [shape = 'u8[16384]{0}', space=vmem, size = 0x4000, scoped, tag = 'input window, operand 2, single buffered']
    #allocation5 [shape = 's32[1]{0}', space=sflag, size = 0x4, scoped, tag = 'scoped memory for tpu_custom_call.1']
    #allocation6 [shape = 's32[1]{0}', space=sflag, size = 0x4, scoped, tag = 'scoped memory for tpu_custom_call.1']
    #allocation7 [shape = 'u8[16384]{0}', space=vmem, size = 0x4000, scoped, tag = 'output window, operand 0, single buffered']
    %10 = vsyncpa [#allocation5], 0
    %11 = vsyncpa [#allocation6], 0
    // Predicated region
    $region2: #{tpu_custom_call.1} parent=1 // pred_check
      _
    $region3: #{tpu_custom_call.1} parent=1 // pred_check_branch
      %13 = sbr.rel (0) target = $region5
    $region4: #{tpu_custom_call.1} parent=1 // pred_region
      _
    $region5: #{tpu_custom_call.1} parent=1 // pred_fallthru
      _
    // Predicated region
    $region6: #{tpu_custom_call.1} parent=1 // pred_check
      _
    $region7: #{tpu_custom_call.1} parent=1 // pred_check_branch
      %15 = sbr.rel (0) target = $region9
    $region8: #{tpu_custom_call.1} parent=1 // pred_region
      _
    $region9: #{tpu_custom_call.1} parent=1 // pred_fallthru
      _
    // Predicated region
    $region10: #{tpu_custom_call.1} parent=1 // pred_check
      _
    $region11: #{tpu_custom_call.1} parent=1 // pred_check_branch
      %17 = sbr.rel (0) target = $region13
    $region12: #{tpu_custom_call.1} parent=1 // pred_region
      %s19 = ssub.s32 512, 512
      %20 = vsyncadd [#allocation5], %s19
      %s22 = sshll.u32 [#allocation4], 4
      %s23 = int_to_ptr.vmem [resolvable:$true] %s22
      %25 = dma.hbm_to_vmem [thread:$0]  %s2, 512, %s23, [#allocation5]
    $region13: #{tpu_custom_call.1} parent=1 // pred_fallthru
      _
    // Predicated region
    $region14: #{tpu_custom_call.1} parent=1 // pred_check
      _
    $region15: #{tpu_custom_call.1} parent=1 // pred_check_branch
      %27 = sbr.rel (0) target = $region17
    $region16: #{tpu_custom_call.1} parent=1 // pred_region
      %28 = dma.done [#allocation5], 512
    $region17: #{tpu_custom_call.1} parent=1 // pred_fallthru
      _
    %s29 = sld [smem:[#allocation2]]
    %s30 = sld [smem:[#allocation3]]
    %v31 = vld [vmem:[#allocation4] sm:$0xff]
    %v32 = vld [vmem:[#allocation4 + $0x8] sm:$0xff]
    %v33 = vld [vmem:[#allocation4 + $0x10] sm:$0xff]
    %v34 = vld [vmem:[#allocation4 + $0x18] sm:$0xff]
    %v35 = vstv %s29
    %v36 = vmul.f32 %v31, %v35
    %v37 = vmul.f32 %v32, %v35
    %v38 = vmul.f32 %v33, %v35
    %v39 = vmul.f32 %v34, %v35
    %v40 = vstv %s30
    %v41 = vadd.f32 %v36, %v40
    %v42 = vadd.f32 %v37, %v40
    %v43 = vadd.f32 %v38, %v40
    %v44 = vadd.f32 %v39, %v40
    %45 = vst [vmem:[#allocation7] sm:$0xff] %v41
    %46 = vst [vmem:[#allocation7 + $0x8] sm:$0xff] %v42
    %47 = vst [vmem:[#allocation7 + $0x10] sm:$0xff] %v43
    %48 = vst [vmem:[#allocation7 + $0x18] sm:$0xff] %v44
    // Predicated region
    $region18: #{tpu_custom_call.1} parent=1 // pred_check
      _
    $region19: #{tpu_custom_call.1} parent=1 // pred_check_branch
      %50 = sbr.rel (0) target = $region21
    $region20: #{tpu_custom_call.1} parent=1 // pred_region
      %s52 = ssub.s32 512, 512
      %53 = vsyncadd [#allocation6], %s52
      %s55 = sshll.u32 [#allocation7], 4
      %s56 = int_to_ptr.vmem [resolvable:$true] %s55
      %58 = dma.vmem_to_hbm [thread:$0]  %s56, 512, %s3, [#allocation6]
    $region21: #{tpu_custom_call.1} parent=1 // pred_fallthru
      _
    // Predicated region
    $region22: #{tpu_custom_call.1} parent=1 // pred_check
      _
    $region23: #{tpu_custom_call.1} parent=1 // pred_check_branch
      %60 = sbr.rel (0) target = $region25
    $region24: #{tpu_custom_call.1} parent=1 // pred_region
      %61 = dma.done [#allocation6], 512
    $region25: #{tpu_custom_call.1} parent=1 // pred_fallthru
      _
    %62 = vsyncpa [#allocation5], 1
    %63 = vsyncpa [#allocation6], 1

</llo_original>
